<compile_context>
chip_gen: v5e
topology: v5e:2x2
jax: 0.10.0
libtpu: 0.0.40
codegen_flags: <defaults>
</compile_context>

<pallas_src>
import jax
import jax.numpy as jnp
from jax import lax
from jax.experimental import pallas as pl
from jax.experimental.pallas import tpu as pltpu


def _fused_mlp_kernel(x_ref, w1_ref, b1_ref, w2_ref, b2_ref, w3_ref, b3_ref,
                      ot_ref):
    # x_ref: (TB, IN) tile in natural layout straight from HBM.
    # All activations are computed transposed -- (features, TB) -- so the big
    # batch dimension sits on the lane axis: lane-dense MXU operands, results
    # and output stores (no vst.msk partial stores).
    x = x_ref[...]

    # Layer 1: relu(W1 @ x^T + b1), shape (H1, TB).
    # Contract the last dims of both operands ('ok,nk->on') so no explicit
    # transpose of the streamed tile is materialized in the wrapper.
    h1 = lax.dot_general(w1_ref[...], x, (((1,), (1,)), ((), ())),
                         preferred_element_type=jnp.float32)
    h1 = jnp.maximum(h1 + b1_ref[...], 0.0)

    # Layer 2: relu(W2 @ h1 + b2), shape (H2, TB).
    h2 = jnp.dot(w2_ref[...], h1, preferred_element_type=jnp.float32)
    h2 = jnp.maximum(h2 + b2_ref[...], 0.0)

    # Layer 3: W3 @ h2 + b3, shape (OUT, TB) -- lane-dense store.
    o = jnp.dot(w3_ref[...], h2, preferred_element_type=jnp.float32) + b3_ref[...]
    ot_ref[...] = o.astype(ot_ref.dtype)


def _round_up(x, m):
    return ((x + m - 1) // m) * m


def skeleton_forward(x, params, *, tile_batch=2048, out_transposed=False):
    """Fused Skeleton (3-layer Linear+ReLU config) forward via one Pallas kernel.

    x: (batch, in_features) float array (natural layout; no pre-transpose).
    params: (w1, b1, w2, b2, w3, b3) with w stored (out, in) and b (out, 1).
    tile_batch: preferred lanes per grid step (multiple of 256; sweep 2048-8192).
    out_transposed: if True, return (out_dim, batch) and let the consumer fuse
                    the final transpose; default returns (batch, out_dim).
    """
    w1, b1, w2, b2, w3, b3 = params
    batch, in_features = x.shape
    out_dim = w3.shape[0]

    # Tile selection:
    #  * multiple of 256 (aligns with v6e/v7x 256-wide MXU; 128 suffices on v5e)
    #  * keep >=2 grid steps so v7x's two TensorCores both get work
    #    (dimension_semantics=("parallel",) shards the grid across them)
    #  * never larger than needed for the batch; tiny batches use one
    #    full-array block (always BlockSpec-legal).
    assert tile_batch % 256 == 0
    if batch <= 256:
        tb = batch
    else:
        tb = min(tile_batch, _round_up(pl.cdiv(batch, 2), 256))
    n_tiles = pl.cdiv(batch, tb)
    # No padding: the last partial block's OOB columns compute garbage that is
    # masked on writeback (each batch column is independent).

    vmem = pltpu.MemorySpace.VMEM
    # Weights/biases: full-array blocks with constant index_map -> VMEM-resident
    # across all grid iterations; only the x / output tiles are streamed.
    resident = lambda a: pl.BlockSpec(a.shape, lambda i: (0, 0),
                                      memory_space=vmem)

    ot = pl.pallas_call(
        _fused_mlp_kernel,
        out_shape=jax.ShapeDtypeStruct((out_dim, batch), jnp.float32),
        grid=(n_tiles,),
        in_specs=[
            pl.BlockSpec((tb, in_features), lambda i: (i, 0),
                         memory_space=vmem),
            resident(w1), resident(b1),
            resident(w2), resident(b2),
            resident(w3), resident(b3),
        ],
        out_specs=pl.BlockSpec((out_dim, tb), lambda i: (0, i),
                               memory_space=vmem),
        compiler_params=pltpu.CompilerParams(
            dimension_semantics=("parallel",)),
    )(x, w1, b1, w2, b2, w3, b3)

    if out_transposed:
        return ot                      # (out_dim, batch): consumer fuses .T
    return ot.T                        # (batch, out_dim): module semantics


def init_params(key, in_features, dims):
    """Deterministic init matching nn.Linear; weights (out, in), biases (out, 1)."""
    params = []
    fan_in = in_features
    for d in dims:
        key, kw, kb = jax.random.split(key, 3)
        bound = 1.0 / jnp.sqrt(jnp.float32(fan_in))
        w = jax.random.uniform(kw, (d, fan_in), jnp.float32, -bound, bound)
        b = jax.random.uniform(kb, (d, 1), jnp.float32, -bound, bound)
        params += [w, b]
        fan_in = d
    return params


def reference_forward(x, params):
    w1, b1, w2, b2, w3, b3 = params
    h1 = jnp.maximum(x @ w1.T + b1.T, 0.0)
    h2 = jnp.maximum(h1 @ w2.T + b2.T, 0.0)
    return h2 @ w3.T + b3.T


if __name__ == "__main__":
    key = jax.random.PRNGKey(0)
    key, kx = jax.random.split(key)

    # Batch intentionally NOT a multiple of the tile to exercise the
    # partial-block masking path (384 -> two 256-lane tiles, second partial).
    batch, in_features = 384, 16
    dims = [32, 32, 8]  # layers_dimensions for the three Linear layers

    x = jax.random.normal(kx, (batch, in_features), jnp.float32)
    params = init_params(key, in_features, dims)

    out = skeleton_forward(x, params)
    out = jax.block_until_ready(out)

    ref = reference_forward(x, params)
    assert out.shape == (batch, dims[-1])
    assert jnp.allclose(out, ref, atol=2e-4, rtol=2e-4), \
        float(jnp.max(jnp.abs(out - ref)))

    # TODO(synk): the RNN/GRU/LSTM branch of Skeleton.forward and nn.Dropout
    # layers (drops != None) are not part of this Linear-only configuration;
    # eval-mode dropout is identity anyway.
    print("KERNEL_OK")
</pallas_src>

<mosaic_0001>
module attributes {stable_mosaic.version = 11 : i64} {
  func.func @_fused_mlp_kernel(%arg0: i32, %arg1: memref<256x16xf32, #tpu.memory_space<vmem>>, %arg2: memref<32x16xf32, #tpu.memory_space<vmem>>, %arg3: memref<32x1xf32, #tpu.memory_space<vmem>>, %arg4: memref<32x32xf32, #tpu.memory_space<vmem>>, %arg5: memref<32x1xf32, #tpu.memory_space<vmem>>, %arg6: memref<8x32xf32, #tpu.memory_space<vmem>>, %arg7: memref<8x1xf32, #tpu.memory_space<vmem>>, %arg8: memref<8x256xf32, #tpu.memory_space<vmem>>) attributes {dimension_semantics = [#tpu.dimension_semantics<parallel>], iteration_bounds = array<i64: 2>, scalar_prefetch = 0 : i64, scratch_operands = 0 : i64, tpu.core_type = #tpu.core_type<tc>, window_params = [{transform_indices = @transform_0, window_bounds = array<i64: 256, 16>}, {pipeline_mode = #tpu.pipeline_mode<synchronous>, transform_indices = @transform_1, window_bounds = array<i64: 32, 16>}, {pipeline_mode = #tpu.pipeline_mode<synchronous>, transform_indices = @transform_2, window_bounds = array<i64: 32, 1>}, {pipeline_mode = #tpu.pipeline_mode<synchronous>, transform_indices = @transform_3, window_bounds = array<i64: 32, 32>}, {pipeline_mode = #tpu.pipeline_mode<synchronous>, transform_indices = @transform_4, window_bounds = array<i64: 32, 1>}, {pipeline_mode = #tpu.pipeline_mode<synchronous>, transform_indices = @transform_5, window_bounds = array<i64: 8, 32>}, {pipeline_mode = #tpu.pipeline_mode<synchronous>, transform_indices = @transform_6, window_bounds = array<i64: 8, 1>}, {transform_indices = @transform_7, window_bounds = array<i64: 8, 256>}]} {
    %c0 = arith.constant 0 : index
    %c0_0 = arith.constant 0 : index
    %0 = vector.load %arg1[%c0, %c0_0] : memref<256x16xf32, #tpu.memory_space<vmem>>, vector<256x16xf32>
    %c0_1 = arith.constant 0 : index
    %c0_2 = arith.constant 0 : index
    %1 = vector.load %arg2[%c0_1, %c0_2] : memref<32x16xf32, #tpu.memory_space<vmem>>, vector<32x16xf32>
    %cst = arith.constant dense<0.000000e+00> : vector<32x256xf32>
    %2 = tpu.matmul %1, %0, %cst {dimension_numbers = #tpu.dot_dimension_numbers<[1], [1], [0], [0], [0, 0, 1, 0], [], []>} : vector<32x16xf32>, vector<256x16xf32>, vector<32x256xf32> -> vector<32x256xf32>
    %c0_3 = arith.constant 0 : index
    %c0_4 = arith.constant 0 : index
    %3 = vector.load %arg3[%c0_3, %c0_4] : memref<32x1xf32, #tpu.memory_space<vmem>>, vector<32x1xf32>
    %4 = vector.broadcast %3 : vector<32x1xf32> to vector<32x256xf32>
    %5 = arith.addf %2, %4 : vector<32x256xf32>
    %cst_5 = arith.constant 0.000000e+00 : f32
    %6 = vector.broadcast %cst_5 : f32 to vector<32x256xf32>
    %7 = arith.maximumf %5, %6 : vector<32x256xf32>
    %c0_6 = arith.constant 0 : index
    %c0_7 = arith.constant 0 : index
    %8 = vector.load %arg4[%c0_6, %c0_7] : memref<32x32xf32, #tpu.memory_space<vmem>>, vector<32x32xf32>
    %cst_8 = arith.constant dense<0.000000e+00> : vector<32x256xf32>
    %9 = tpu.matmul %8, %7, %cst_8 {dimension_numbers = #tpu.dot_dimension_numbers<[1], [0], [0], [1], [0, 0, 1, 1], [], []>} : vector<32x32xf32>, vector<32x256xf32>, vector<32x256xf32> -> vector<32x256xf32>
    %c0_9 = arith.constant 0 : index
    %c0_10 = arith.constant 0 : index
    %10 = vector.load %arg5[%c0_9, %c0_10] : memref<32x1xf32, #tpu.memory_space<vmem>>, vector<32x1xf32>
    %11 = vector.broadcast %10 : vector<32x1xf32> to vector<32x256xf32>
    %12 = arith.addf %9, %11 : vector<32x256xf32>
    %cst_11 = arith.constant 0.000000e+00 : f32
    %13 = vector.broadcast %cst_11 : f32 to vector<32x256xf32>
    %14 = arith.maximumf %12, %13 : vector<32x256xf32>
    %c0_12 = arith.constant 0 : index
    %c0_13 = arith.constant 0 : index
    %15 = vector.load %arg6[%c0_12, %c0_13] : memref<8x32xf32, #tpu.memory_space<vmem>>, vector<8x32xf32>
    %cst_14 = arith.constant dense<0.000000e+00> : vector<8x256xf32>
    %16 = tpu.matmul %15, %14, %cst_14 {dimension_numbers = #tpu.dot_dimension_numbers<[1], [0], [0], [1], [0, 0, 1, 1], [], []>} : vector<8x32xf32>, vector<32x256xf32>, vector<8x256xf32> -> vector<8x256xf32>
    %c0_15 = arith.constant 0 : index
    %c0_16 = arith.constant 0 : index
    %17 = vector.load %arg7[%c0_15, %c0_16] : memref<8x1xf32, #tpu.memory_space<vmem>>, vector<8x1xf32>
    %18 = vector.broadcast %17 : vector<8x1xf32> to vector<8x256xf32>
    %19 = arith.addf %16, %18 : vector<8x256xf32>
    %c0_17 = arith.constant 0 : index
    %c0_18 = arith.constant 0 : index
    %20 = vector.load %arg8[%c0_17, %c0_18] : memref<8x256xf32, #tpu.memory_space<vmem>>, vector<8x256xf32>
    tpu.vector_store %arg8[%c0_17, %c0_18], %19 {strides = array<i32>} : memref<8x256xf32, #tpu.memory_space<vmem>>, vector<8x256xf32>,
    return
  }
  func.func @transform_0(%arg0: i32) -> (i32, i32) {
    %c0_i32 = arith.constant 0 : i32
    %c0_i32_0 = arith.constant 0 : i32
    return %arg0, %c0_i32 : i32, i32
  }
  func.func @transform_1(%arg0: i32) -> (i32, i32) {
    %c0_i32 = arith.constant 0 : i32
    %c0_i32_0 = arith.constant 0 : i32
    %c0_i32_1 = arith.constant 0 : i32
    return %c0_i32, %c0_i32_0 : i32, i32
  }
  func.func @transform_2(%arg0: i32) -> (i32, i32) {
    %c0_i32 = arith.constant 0 : i32
    %c0_i32_0 = arith.constant 0 : i32
    %c0_i32_1 = arith.constant 0 : i32
    return %c0_i32, %c0_i32_0 : i32, i32
  }
  func.func @transform_3(%arg0: i32) -> (i32, i32) {
    %c0_i32 = arith.constant 0 : i32
    %c0_i32_0 = arith.constant 0 : i32
    %c0_i32_1 = arith.constant 0 : i32
    return %c0_i32, %c0_i32_0 : i32, i32
  }
  func.func @transform_4(%arg0: i32) -> (i32, i32) {
    %c0_i32 = arith.constant 0 : i32
    %c0_i32_0 = arith.constant 0 : i32
    %c0_i32_1 = arith.constant 0 : i32
    return %c0_i32, %c0_i32_0 : i32, i32
  }
  func.func @transform_5(%arg0: i32) -> (i32, i32) {
    %c0_i32 = arith.constant 0 : i32
    %c0_i32_0 = arith.constant 0 : i32
    %c0_i32_1 = arith.constant 0 : i32
    return %c0_i32, %c0_i32_0 : i32, i32
  }
  func.func @transform_6(%arg0: i32) -> (i32, i32) {
    %c0_i32 = arith.constant 0 : i32
    %c0_i32_0 = arith.constant 0 : i32
    %c0_i32_1 = arith.constant 0 : i32
    return %c0_i32, %c0_i32_0 : i32, i32
  }
  func.func @transform_7(%arg0: i32) -> (i32, i32) {
    %c0_i32 = arith.constant 0 : i32
    %c0_i32_0 = arith.constant 0 : i32
    return %c0_i32, %arg0 : i32, i32
  }
}

</mosaic_0001>

<llo_original>
// kernel: tpu_custom_call.1
$region0: #{tpu_custom_call.1}
  #allocation0 [shape = 'u32[]', space=smem, size = 0x4, offset = 0x4, fixed_abs, tag = 'smem constant byte address 0x4 - core index']
  #allocation1 [shape = 'u32[72,128]{1,0:T(1,128)}', space=vmem, size = 0x9000, scoped, tag = 'internal scratch']
  %s0 = inlined_call_operand.vmem [shape: f32[384,16], index: 0, kind: input, shape index: {}]
  %s1 = inlined_call_operand.vmem [shape: f32[32,16], index: 1, kind: input, shape index: {}]
  %s2 = inlined_call_operand.vmem [shape: f32[32,1], index: 2, kind: input, shape index: {}]
  %s3 = inlined_call_operand.vmem [shape: f32[32,32], index: 3, kind: input, shape index: {}]
  %s4 = inlined_call_operand.vmem [shape: f32[32,1], index: 4, kind: input, shape index: {}]
  %s5 = inlined_call_operand.vmem [shape: f32[8,32], index: 5, kind: input, shape index: {}]
  %s6 = inlined_call_operand.vmem [shape: f32[8,1], index: 6, kind: input, shape index: {}]
  %s7 = inlined_call_operand.hbm [shape: f32[8,384], index: 7, kind: output, shape index: {}]
  %s8 = sld [smem:[#allocation0]]
  $region61: #{tpu_custom_call.1} parent=0
    _
  %s10 = ssub.s32 1, %s8
  %s11 = scalar_select 0, %s10, %s8
  $region1: #{tpu_custom_call.1} parent=0
    #allocation2 [shape = 'u8[16384]{0}', space=vmem, size = 0x4000, scoped, tag = 'output window, operand 0']
    #allocation3 [shape = 's32[2]{0}', space=sflag, size = 0x8, scoped, tag = 'scoped memory for tpu_custom_call.1']
    %12 = vsyncpa [#allocation3], 0
    %s13 = scalar_lea.sflag [#allocation3], 1
    %14 = vsyncpa %s13, 0
    loop: start=0, step=1, limit=4
    $region2: #{tpu_custom_call.1} parent=1 // loop_pre_header
      _
    $region3: #{tpu_custom_call.1} parent=1 // loop_header
      %s16 = sphi 0, %s20
      %p17 = scmp.ge.s32.totalorder %s16, 4
      %s26 = sphi 0, %s28
      %s29 = sphi 0, %s26
      %s30 = sphi 0, %s29
      %s46 = sphi 0, %s30
      %s50 = sphi 0, %s50
      %s52 = sphi 0, %s50
      %s53 = sphi 0, %s52
      %s67 = sphi 0, %s53
      %s71 = sphi 0, %s71
      %s73 = sphi 0, %s71
      %s74 = sphi 0, %s73
      %s88 = sphi 0, %s74
      %s92 = sphi 0, %s92
      %s94 = sphi 0, %s92
      %s95 = sphi 0, %s94
      %s109 = sphi 0, %s95
      %s113 = sphi 0, %s113
      %s115 = sphi 0, %s113
      %s116 = sphi 0, %s115
      %s130 = sphi 0, %s116
      %s134 = sphi 0, %s134
      %s136 = sphi 0, %s134
      %s137 = sphi 0, %s136
      %s151 = sphi 0, %s137
      %s155 = sphi 0, %s155
      %s157 = sphi 0, %s155
      %s158 = sphi 0, %s157
      %s172 = sphi 0, %s158
      %s178 = sphi 0, %s180
      %s181 = sphi 0, %s178
      %s182 = sphi 0, %s181
      %s198 = sphi 0, %s182
    $region4: #{tpu_custom_call.1} parent=1 // loop_header_branch
      %19 = sbr.rel (%p17) target = $region8
    $region5: #{tpu_custom_call.1} parent=1 // loop_body
      %s21 = ssub.s32 %s16, 1
      %s22 = ssub.s32 %s16, 2
      %s23 = sadd.s32 %s16, 1
      %s24 = ssub.s32 %s16, %s23
      %p25 = scmp.eq.s32.totalorder %s24, 0
      %s27 = sadd.s32 %s26, 1
      %s28 = scalar_select %p25, %s26, %s27
      %p31 = pneg %p25
      %p32 = scmp.eq.s32.totalorder %s16, 1
      %p33 = por %p31, %p32
      %p34 = scmp.ne.s32.totalorder %s26, %s29
      %p35 = scmp.eq.s32.totalorder %s16, 0
      %p36 = por %p34, %p35
      %p37 = scmp.ne.s32.totalorder %s26, %s29
      %p38 = scmp.eq.s32.totalorder %s21, 1
      %p39 = por %p37, %p38
      %p40 = scmp.ne.s32.totalorder %s29, %s30
      %p41 = scmp.eq.s32.totalorder %s21, 0
      %p42 = por %p40, %p41
      %p43 = scmp.ne.s32.totalorder %s29, %s30
      %p44 = scmp.eq.s32.totalorder %s22, 1
      %p45 = por %p43, %p44
      %p47 = scmp.ne.s32.totalorder %s30, %s46
      %p48 = scmp.eq.s32.totalorder %s22, 0
      %p49 = por %p47, %p48
      %s51 = sadd.s32 %s50, 1
      %p54 = scmp.eq.s32.totalorder %s16, 1
      %p55 = scmp.ne.s32.totalorder %s50, %s52
      %p56 = scmp.eq.s32.totalorder %s16, 0
      %p57 = por %p55, %p56
      %p58 = scmp.ne.s32.totalorder %s50, %s52
      %p59 = scmp.eq.s32.totalorder %s21, 1
      %p60 = por %p58, %p59
      %p61 = scmp.ne.s32.totalorder %s52, %s53
      %p62 = scmp.eq.s32.totalorder %s21, 0
      %p63 = por %p61, %p62
      %p64 = scmp.ne.s32.totalorder %s52, %s53
      %p65 = scmp.eq.s32.totalorder %s22, 1
      %p66 = por %p64, %p65
      %p68 = scmp.ne.s32.totalorder %s53, %s67
      %p69 = scmp.eq.s32.totalorder %s22, 0
      %p70 = por %p68, %p69
      %s72 = sadd.s32 %s71, 1
      %p75 = scmp.eq.s32.totalorder %s16, 1
      %p76 = scmp.ne.s32.totalorder %s71, %s73
      %p77 = scmp.eq.s32.totalorder %s16, 0
      %p78 = por %p76, %p77
      %p79 = scmp.ne.s32.totalorder %s71, %s73
      %p80 = scmp.eq.s32.totalorder %s21, 1
      %p81 = por %p79, %p80
      %p82 = scmp.ne.s32.totalorder %s73, %s74
      %p83 = scmp.eq.s32.totalorder %s21, 0
      %p84 = por %p82, %p83
      %p85 = scmp.ne.s32.totalorder %s73, %s74
      %p86 = scmp.eq.s32.totalorder %s22, 1
      %p87 = por %p85, %p86
      %p89 = scmp.ne.s32.totalorder %s74, %s88
      %p90 = scmp.eq.s32.totalorder %s22, 0
      %p91 = por %p89, %p90
      %s93 = sadd.s32 %s92, 1
      %p96 = scmp.eq.s32.totalorder %s16, 1
      %p97 = scmp.ne.s32.totalorder %s92, %s94
      %p98 = scmp.eq.s32.totalorder %s16, 0
      %p99 = por %p97, %p98
      %p100 = scmp.ne.s32.totalorder %s92, %s94
      %p101 = scmp.eq.s32.totalorder %s21, 1
      %p102 = por %p100, %p101
      %p103 = scmp.ne.s32.totalorder %s94, %s95
      %p104 = scmp.eq.s32.totalorder %s21, 0
      %p105 = por %p103, %p104
      %p106 = scmp.ne.s32.totalorder %s94, %s95
      %p107 = scmp.eq.s32.totalorder %s22, 1
      %p108 = por %p106, %p107
      %p110 = scmp.ne.s32.totalorder %s95, %s109
      %p111 = scmp.eq.s32.totalorder %s22, 0
      %p112 = por %p110, %p111
      %s114 = sadd.s32 %s113, 1
      %p117 = scmp.eq.s32.totalorder %s16, 1
      %p118 = scmp.ne.s32.totalorder %s113, %s115
      %p119 = scmp.eq.s32.totalorder %s16, 0
      %p120 = por %p118, %p119
      %p121 = scmp.ne.s32.totalorder %s113, %s115
      %p122 = scmp.eq.s32.totalorder %s21, 1
      %p123 = por %p121, %p122
      %p124 = scmp.ne.s32.totalorder %s115, %s116
      %p125 = scmp.eq.s32.totalorder %s21, 0
      %p126 = por %p124, %p125
      %p127 = scmp.ne.s32.totalorder %s115, %s116
      %p128 = scmp.eq.s32.totalorder %s22, 1
      %p129 = por %p127, %p128
      %p131 = scmp.ne.s32.totalorder %s116, %s130
      %p132 = scmp.eq.s32.totalorder %s22, 0
      %p133 = por %p131, %p132
      %s135 = sadd.s32 %s134, 1
      %p138 = scmp.eq.s32.totalorder %s16, 1
      %p139 = scmp.ne.s32.totalorder %s134, %s136
      %p140 = scmp.eq.s32.totalorder %s16, 0
      %p141 = por %p139, %p140
      %p142 = scmp.ne.s32.totalorder %s134, %s136
      %p143 = scmp.eq.s32.totalorder %s21, 1
      %p144 = por %p142, %p143
      %p145 = scmp.ne.s32.totalorder %s136, %s137
      %p146 = scmp.eq.s32.totalorder %s21, 0
      %p147 = por %p145, %p146
      %p148 = scmp.ne.s32.totalorder %s136, %s137
      %p149 = scmp.eq.s32.totalorder %s22, 1
      %p150 = por %p148, %p149
      %p152 = scmp.ne.s32.totalorder %s137, %s151
      %p153 = scmp.eq.s32.totalorder %s22, 0
      %p154 = por %p152, %p153
      %s156 = sadd.s32 %s155, 1
      %p159 = scmp.eq.s32.totalorder %s16, 1
      %p160 = scmp.ne.s32.totalorder %s155, %s157
      %p161 = scmp.eq.s32.totalorder %s16, 0
      %p162 = por %p160, %p161
      %p163 = scmp.ne.s32.totalorder %s155, %s157
      %p164 = scmp.eq.s32.totalorder %s21, 1
      %p165 = por %p163, %p164
      %p166 = scmp.ne.s32.totalorder %s157, %s158
      %p167 = scmp.eq.s32.totalorder %s21, 0
      %p168 = por %p166, %p167
      %p169 = scmp.ne.s32.totalorder %s157, %s158
      %p170 = scmp.eq.s32.totalorder %s22, 1
      %p171 = por %p169, %p170
      %p173 = scmp.ne.s32.totalorder %s158, %s172
      %p174 = scmp.eq.s32.totalorder %s22, 0
      %p175 = por %p173, %p174
      %s176 = ssub.s32 %s16, %s23
      %p177 = scmp.eq.s32.totalorder %s176, 0
      %s179 = sadd.s32 %s178, 1
      %s180 = scalar_select %p177, %s178, %s179
      %p183 = pneg %p177
      %p184 = scmp.eq.s32.totalorder %s16, 1
      %p185 = por %p183, %p184
      %p186 = scmp.ne.s32.totalorder %s178, %s181
      %p187 = scmp.eq.s32.totalorder %s16, 0
      %p188 = por %p186, %p187
      %p189 = scmp.ne.s32.totalorder %s178, %s181
      %p190 = scmp.eq.s32.totalorder %s21, 1
      %p191 = por %p189, %p190
      %p192 = scmp.ne.s32.totalorder %s181, %s182
      %p193 = scmp.eq.s32.totalorder %s21, 0
      %p194 = por %p192, %p193
      %p195 = scmp.ne.s32.totalorder %s181, %s182
      %p196 = scmp.eq.s32.totalorder %s22, 1
      %p197 = por %p195, %p196
      %p199 = scmp.ne.s32.totalorder %s182, %s198
      %p200 = scmp.eq.s32.totalorder %s22, 0
      %p201 = por %p199, %p200
      %p202 = scmp.le.s32.totalorder 1, %s16
      %p203 = scmp.lt.s32.totalorder %s16, 3
      %p204 = pnand %p202, %p203
      %p205 = pneg %p204
      // Predicated region
      $region9: #{tpu_custom_call.1} parent=5 // pred_check
        _
      $region10: #{tpu_custom_call.1} parent=5 // pred_check_branch
        %207 = sbr.rel (%p204) target = $region12
      $region11: #{tpu_custom_call.1} parent=5 // pred_region
        %s208 = ssub.s32 %s16, 1
        // Predicated region
        $region13: #{tpu_custom_call.1} parent=11 // pred_check
          %p209 = pneg %p63
        $region14: #{tpu_custom_call.1} parent=11 // pred_check_branch
          %211 = sbr.rel (%p209) target = $region16
        $region15: #{tpu_custom_call.1} parent=11 // pred_region
          _
        $region16: #{tpu_custom_call.1} parent=11 // pred_fallthru
          _
        // Predicated region
        $region17: #{tpu_custom_call.1} parent=11 // pred_check
          %p212 = pneg %p84
        $region18: #{tpu_custom_call.1} parent=11 // pred_check_branch
          %214 = sbr.rel (%p212) target = $region20
        $region19: #{tpu_custom_call.1} parent=11 // pred_region
          _
        $region20: #{tpu_custom_call.1} parent=11 // pred_fallthru
          _
        // Predicated region
        $region21: #{tpu_custom_call.1} parent=11 // pred_check
          %p215 = pneg %p105
        $region22: #{tpu_custom_call.1} parent=11 // pred_check_branch
          %217 = sbr.rel (%p215) target = $region24
        $region23: #{tpu_custom_call.1} parent=11 // pred_region
          _
        $region24: #{tpu_custom_call.1} parent=11 // pred_fallthru
          _
        // Predicated region
        $region25: #{tpu_custom_call.1} parent=11 // pred_check
          %p218 = pneg %p126
        $region26: #{tpu_custom_call.1} parent=11 // pred_check_branch
          %220 = sbr.rel (%p218) target = $region28
        $region27: #{tpu_custom_call.1} parent=11 // pred_region
          _
        $region28: #{tpu_custom_call.1} parent=11 // pred_fallthru
          _
        // Predicated region
        $region29: #{tpu_custom_call.1} parent=11 // pred_check
          %p221 = pneg %p147
        $region30: #{tpu_custom_call.1} parent=11 // pred_check_branch
          %223 = sbr.rel (%p221) target = $region32
        $region31: #{tpu_custom_call.1} parent=11 // pred_region
          _
        $region32: #{tpu_custom_call.1} parent=11 // pred_fallthru
          _
        // Predicated region
        $region33: #{tpu_custom_call.1} parent=11 // pred_check
          %p224 = pneg %p168
        $region34: #{tpu_custom_call.1} parent=11 // pred_check_branch
          %226 = sbr.rel (%p224) target = $region36
        $region35: #{tpu_custom_call.1} parent=11 // pred_region
          _
        $region36: #{tpu_custom_call.1} parent=11 // pred_fallthru
          _
      $region12: #{tpu_custom_call.1} parent=5 // pred_fallthru
        _
      %p227 = scmp.lt.s32.totalorder %s16, 2
      // Predicated region
      $region37: #{tpu_custom_call.1} parent=5 // pred_check
        %p228 = pneg %p227
      $region38: #{tpu_custom_call.1} parent=5 // pred_check_branch
        %230 = sbr.rel (%p228) target = $region40
      $region39: #{tpu_custom_call.1} parent=5 // pred_region
        // Predicated region
        $region41: #{tpu_custom_call.1} parent=39 // pred_check
          %p231 = pneg %p36
        $region42: #{tpu_custom_call.1} parent=39 // pred_check_branch
          %233 = sbr.rel (%p231) target = $region44
        $region43: #{tpu_custom_call.1} parent=39 // pred_region
          %s234 = smul.u32 32, %s16
          %s235 = ssub.s32 48, %s234
          %p236 = scmp.lt.s32.totalorder %s235, 32
          %s237 = scalar_select %p236, %s235, 32
          %s238 = smul.u32 8, %s237
          %p239 = scmp.lt.s32.totalorder %s234, 47
          %s240 = scalar_select %p239, %s234, 47
          %s241 = smul.addr %s240, 8
          %s242 = scalar_lea.vmem %s0, %s241
          %s243 = smul.u32 32, %s16
          %s244 = ssub.s32 48, %s243
          %p245 = scmp.lt.s32.totalorder %s244, 32
          %s246 = scalar_select %p245, %s244, 32
          %s247 = smul.u32 8, %s246
        $region44: #{tpu_custom_call.1} parent=39 // pred_fallthru
          _
      $region40: #{tpu_custom_call.1} parent=5 // pred_fallthru
        _
      %p248 = scmp.le.s32.totalorder 1, %s16
      %p249 = scmp.lt.s32.totalorder %s16, 3
      %p250 = pnand %p248, %p249
      %p251 = pneg %p250
      // Predicated region
      $region45: #{tpu_custom_call.1} parent=5 // pred_check
        _
      $region46: #{tpu_custom_call.1} parent=5 // pred_check_branch
        %253 = sbr.rel (%p250) target = $region48
      $region47: #{tpu_custom_call.1} parent=5 // pred_region
        %s254 = ssub.s32 %s16, 1
        %s255 = smul.u32 32, %s21
        %s256 = ssub.s32 48, %s255
        %p257 = scmp.lt.s32.totalorder %s256, 32
        %s258 = scalar_select %p257, %s256, 32
        %s259 = smul.u32 8, %s258
        %p260 = scmp.lt.s32.totalorder %s255, 47
        %s261 = scalar_select %p260, %s255, 47
        %s262 = smul.addr %s261, 8
        %s263 = scalar_lea.vmem %s0, %s262
        %p264 = pneg %p42
        %p265 = pneg %p39
        %p266 = pneg %p63
        %p267 = pneg %p60
        %p268 = pneg %p84
        %p269 = pneg %p81
        %p270 = pneg %p105
        %p271 = pneg %p102
        %p272 = pneg %p126
        %p273 = pneg %p123
        %p274 = pneg %p147
        %p275 = pneg %p144
        %p276 = pneg %p168
        %p277 = pneg %p165
        %p278 = pneg %p194
        %p279 = pneg %p191
        %s280 = sand.u32 %s181, 1
        %s281 = scalar_lea.sflag [#allocation3], %s280
        %s282 = sand.u32 %s181, 1
        %s283 = smul.addr %s282, 16
        %s284 = scalar_lea.vmem [#allocation2], %s283
        %s285 = smul.u32 32, %s21
        %s286 = ssub.s32 48, %s285
        %p287 = scmp.lt.s32.totalorder %s286, 32
        %s288 = scalar_select %p287, %s286, 32
        %s289 = smul.u32 8, %s288
        %p290 = scmp.lt.s32.totalorder %s285, 47
        %s291 = scalar_select %p290, %s285, 47
        %s292 = smul.addr %s291, 8
        %s293 = scalar_lea.vmem %s0, %s292
        %s294 = smul.u32 32, %s21
        %s295 = ssub.s32 48, %s294
        %p296 = scmp.lt.s32.totalorder %s295, 32
        %s297 = scalar_select %p296, %s295, 32
        %s298 = smul.u32 8, %s297
        %s299 = smul.u32 2, %s21
        %s300 = ssub.s32 3, %s299
        %p301 = scmp.lt.s32.totalorder %s300, 2
        %s302 = scalar_select %p301, %s300, 2
        %s303 = smul.u32 8, %s302
        %v304 = vld [vmem:[%s293] sm:$0xff]
        %v305 = vld [vmem:[%s293 + $0x8] sm:$0xff]
        %v306 = vld [vmem:[%s293 + $0x10] sm:$0xff]
        %v307 = vld [vmem:[%s293 + $0x18] sm:$0xff]
        %v308 = vld [vmem:[%s293 + $0x20] sm:$0xff]
        %v309 = vld [vmem:[%s293 + $0x28] sm:$0xff]
        %v310 = vld [vmem:[%s293 + $0x30] sm:$0xff]
        %v311 = vld [vmem:[%s293 + $0x38] sm:$0xff]
        %v312 = vld [vmem:[%s293 + $0x40] sm:$0xff]
        %v313 = vld [vmem:[%s293 + $0x48] sm:$0xff]
        %v314 = vld [vmem:[%s293 + $0x50] sm:$0xff]
        %v315 = vld [vmem:[%s293 + $0x58] sm:$0xff]
        %v316 = vld [vmem:[%s293 + $0x60] sm:$0xff]
        %v317 = vld [vmem:[%s293 + $0x68] sm:$0xff]
        %v318 = vld [vmem:[%s293 + $0x70] sm:$0xff]
        %v319 = vld [vmem:[%s293 + $0x78] sm:$0xff]
        %v320 = vld [vmem:[%s293 + $0x80] sm:$0xff]
        %v321 = vld [vmem:[%s293 + $0x88] sm:$0xff]
        %v322 = vld [vmem:[%s293 + $0x90] sm:$0xff]
        %v323 = vld [vmem:[%s293 + $0x98] sm:$0xff]
        %v324 = vld [vmem:[%s293 + $0xa0] sm:$0xff]
        %v325 = vld [vmem:[%s293 + $0xa8] sm:$0xff]
        %v326 = vld [vmem:[%s293 + $0xb0] sm:$0xff]
        %v327 = vld [vmem:[%s293 + $0xb8] sm:$0xff]
        %v328 = vld [vmem:[%s293 + $0xc0] sm:$0xff]
        %v329 = vld [vmem:[%s293 + $0xc8] sm:$0xff]
        %v330 = vld [vmem:[%s293 + $0xd0] sm:$0xff]
        %v331 = vld [vmem:[%s293 + $0xd8] sm:$0xff]
        %v332 = vld [vmem:[%s293 + $0xe0] sm:$0xff]
        %v333 = vld [vmem:[%s293 + $0xe8] sm:$0xff]
        %v334 = vld [vmem:[%s293 + $0xf0] sm:$0xff]
        %v335 = vld [vmem:[%s293 + $0xf8] sm:$0xff]
        %v336 = vld [vmem:[%s1] sm:$0xff]
        %v337 = vld [vmem:[%s1 + $0x8] sm:$0xff]
        %v338 = vld [vmem:[%s1 + $0x10] sm:$0xff]
        %v339 = vld [vmem:[%s1 + $0x18] sm:$0xff]
        %v340 = vld [vmem:[%s2] sm:$0xff]
        %v341 = vld [vmem:[%s2 + $0x8] sm:$0xff]
        %v342 = vld [vmem:[%s2 + $0x10] sm:$0xff]
        %v343 = vld [vmem:[%s2 + $0x18] sm:$0xff]
        %345 = vset.pattern.permute.xlu0 0
        %346 = vperm.xlu0 %345, %v340
        %v347 = vpop.permute.xlu0 %346
        %350 = vset.pattern.permute.xlu0 0
        %351 = vperm.xlu0 %350, %v341
        %v352 = vpop.permute.xlu0 %351
        %355 = vset.pattern.permute.xlu0 0
        %356 = vperm.xlu0 %355, %v342
        %v357 = vpop.permute.xlu0 %356
        %360 = vset.pattern.permute.xlu0 0
        %361 = vperm.xlu0 %360, %v343
        %v362 = vpop.permute.xlu0 %361
        %vm364 = vcmask 130048
        %v366 = vsel %vm364, %v336, 0
        %v369 = vsel %vm364, %v337, 0
        %v372 = vsel %vm364, %v338, 0
        %v375 = vsel %vm364, %v339, 0
        %v378 = vsel %vm364, %v304, 0
        %v381 = vsel %vm364, %v305, 0
        %v384 = vsel %vm364, %v306, 0
        %v387 = vsel %vm364, %v307, 0
        %v390 = vsel %vm364, %v308, 0
        %v393 = vsel %vm364, %v309, 0
        %v396 = vsel %vm364, %v310, 0
        %v399 = vsel %vm364, %v311, 0
        %v402 = vsel %vm364, %v312, 0
        %v405 = vsel %vm364, %v313, 0
        %v408 = vsel %vm364, %v314, 0
        %v411 = vsel %vm364, %v315, 0
        %v414 = vsel %vm364, %v316, 0
        %v417 = vsel %vm364, %v317, 0
        %v420 = vsel %vm364, %v318, 0
        %v423 = vsel %vm364, %v319, 0
        %v426 = vsel %vm364, %v320, 0
        %v429 = vsel %vm364, %v321, 0
        %v432 = vsel %vm364, %v322, 0
        %v435 = vsel %vm364, %v323, 0
        %v438 = vsel %vm364, %v324, 0
        %v441 = vsel %vm364, %v325, 0
        %v444 = vsel %vm364, %v326, 0
        %v447 = vsel %vm364, %v327, 0
        %v450 = vsel %vm364, %v328, 0
        %v453 = vsel %vm364, %v329, 0
        %v456 = vsel %vm364, %v330, 0
        %v459 = vsel %vm364, %v331, 0
        %v462 = vsel %vm364, %v332, 0
        %v465 = vsel %vm364, %v333, 0
        %v468 = vsel %vm364, %v334, 0
        %v471 = vsel %vm364, %v335, 0
        %473 = vmatpush.xpose.msra.mxu0 %v423
        %474 = vmatpush.xpose.msra.mxu0 %v420
        %475 = vmatpush.xpose.msra.mxu0 %v417
        %476 = vmatpush.xpose.msra.mxu0 %v414
        %477 = vmatpush.xpose.msra.mxu0 %v411
        %478 = vmatpush.xpose.msra.mxu0 %v408
        %479 = vmatpush.xpose.msra.mxu0 %v405
        %480 = vmatpush.xpose.msra.mxu0 %v402
        %481 = vmatpush.xpose.msra.mxu0 %v399
        %482 = vmatpush.xpose.msra.mxu0 %v396
        %483 = vmatpush.xpose.msra.mxu0 %v393
        %484 = vmatpush.xpose.msra.mxu0 %v390
        %485 = vmatpush.xpose.msra.mxu0 %v387
        %486 = vmatpush.xpose.msra.mxu0 %v384
        %487 = vmatpush.xpose.msra.mxu0 %v381
        %488 = vmatpush.xpose.msra.mxu0 %v378
        %489 = vmatmul.f32.gmra.mxu0 %v366
        %v490 = vpop.f32.mrf.mxu0
        %v491 = vadd.f32 %v347, %v490
        %492 = vmatmul.f32.gmra.mxu0 %v369
        %v493 = vpop.f32.mrf.mxu0
        %v494 = vadd.f32 %v352, %v493
        %495 = vmatmul.f32.gmra.mxu0 %v372
        %v496 = vpop.f32.mrf.mxu0
        %v497 = vadd.f32 %v357, %v496
        %498 = vmatmul.f32.gmra.mxu0 %v375
        %v499 = vpop.f32.mrf.mxu0
        %v500 = vadd.f32 %v362, %v499
        %501 = vdwg.mxu0
        %502 = vmatpush.xpose.msra.mxu0 %v471
        %503 = vmatpush.xpose.msra.mxu0 %v468
        %504 = vmatpush.xpose.msra.mxu0 %v465
        %505 = vmatpush.xpose.msra.mxu0 %v462
        %506 = vmatpush.xpose.msra.mxu0 %v459
        %507 = vmatpush.xpose.msra.mxu0 %v456
        %508 = vmatpush.xpose.msra.mxu0 %v453
        %509 = vmatpush.xpose.msra.mxu0 %v450
        %510 = vmatpush.xpose.msra.mxu0 %v447
        %511 = vmatpush.xpose.msra.mxu0 %v444
        %512 = vmatpush.xpose.msra.mxu0 %v441
        %513 = vmatpush.xpose.msra.mxu0 %v438
        %514 = vmatpush.xpose.msra.mxu0 %v435
        %515 = vmatpush.xpose.msra.mxu0 %v432
        %516 = vmatpush.xpose.msra.mxu0 %v429
        %517 = vmatpush.xpose.msra.mxu0 %v426
        %518 = vmatmul.f32.gmra.mxu0 %v366
        %v519 = vpop.f32.mrf.mxu0
        %v520 = vadd.f32 %v347, %v519
        %521 = vmatmul.f32.gmra.mxu0 %v369
        %v522 = vpop.f32.mrf.mxu0
        %v523 = vadd.f32 %v352, %v522
        %524 = vmatmul.f32.gmra.mxu0 %v372
        %v525 = vpop.f32.mrf.mxu0
        %v526 = vadd.f32 %v357, %v525
        %527 = vmatmul.f32.gmra.mxu0 %v375
        %v528 = vpop.f32.mrf.mxu0
        %v529 = vadd.f32 %v362, %v528
        %530 = vdwg.mxu0
        %v531 = vmax.f32 %v491, 0.0
        %v532 = vmax.f32 %v520, 0.0
        %v533 = vmax.f32 %v494, 0.0
        %v534 = vmax.f32 %v523, 0.0
        %v535 = vmax.f32 %v497, 0.0
        %v536 = vmax.f32 %v526, 0.0
        %v537 = vmax.f32 %v500, 0.0
        %v538 = vmax.f32 %v529, 0.0
        %v539 = vld [vmem:[%s3] sm:$0xff]
        %v540 = vld [vmem:[%s3 + $0x8] sm:$0xff]
        %v541 = vld [vmem:[%s3 + $0x10] sm:$0xff]
        %v542 = vld [vmem:[%s3 + $0x18] sm:$0xff]
        %v543 = vld [vmem:[%s4] sm:$0xff]
        %v544 = vld [vmem:[%s4 + $0x8] sm:$0xff]
        %v545 = vld [vmem:[%s4 + $0x10] sm:$0xff]
        %v546 = vld [vmem:[%s4 + $0x18] sm:$0xff]
        %548 = vset.pattern.permute.xlu0 0
        %549 = vperm.xlu0 %548, %v543
        %v550 = vpop.permute.xlu0 %549
        %553 = vset.pattern.permute.xlu0 0
        %554 = vperm.xlu0 %553, %v544
        %v555 = vpop.permute.xlu0 %554
        %558 = vset.pattern.permute.xlu0 0
        %559 = vperm.xlu0 %558, %v545
        %v560 = vpop.permute.xlu0 %559
        %563 = vset.pattern.permute.xlu0 0
        %564 = vperm.xlu0 %563, %v546
        %v565 = vpop.permute.xlu0 %564
        %vm567 = vcmask 261120
        %v569 = vsel %vm567, %v539, 0
        %v572 = vsel %vm567, %v540, 0
        %v575 = vsel %vm567, %v541, 0
        %v578 = vsel %vm567, %v542, 0
        %580 = vmatpush.msra.mxu0 0.0
        %581 = vmatpush.msra.mxu0 0.0
        %582 = vmatpush.msra.mxu0 0.0
        %583 = vmatpush.msra.mxu0 0.0
        %584 = vmatpush.msra.mxu0 0.0
        %585 = vmatpush.msra.mxu0 0.0
        %586 = vmatpush.msra.mxu0 0.0
        %587 = vmatpush.msra.mxu0 0.0
        %588 = vmatpush.msra.mxu0 0.0
        %589 = vmatpush.msra.mxu0 0.0
        %590 = vmatpush.msra.mxu0 0.0
        %591 = vmatpush.msra.mxu0 0.0
        %592 = vmatpush.msra.mxu0 %v537
        %593 = vmatpush.msra.mxu0 %v535
        %594 = vmatpush.msra.mxu0 %v533
        %595 = vmatpush.msra.mxu0 %v531
        %596 = vmatmul.f32.gmra.mxu0 %v569
        %v597 = vpop.f32.mrf.mxu0
        %v598 = vadd.f32 %v550, %v597
        %599 = vmatmul.f32.gmra.mxu0 %v572
        %v600 = vpop.f32.mrf.mxu0
        %v601 = vadd.f32 %v555, %v600
        %602 = vmatmul.f32.gmra.mxu0 %v575
        %v603 = vpop.f32.mrf.mxu0
        %v604 = vadd.f32 %v560, %v603
        %605 = vmatmul.f32.gmra.mxu0 %v578
        %v606 = vpop.f32.mrf.mxu0
        %v607 = vadd.f32 %v565, %v606
        %608 = vdwg.mxu0
        %609 = vmatpush.msra.mxu0 0.0
        %610 = vmatpush.msra.mxu0 0.0
        %611 = vmatpush.msra.mxu0 0.0
        %612 = vmatpush.msra.mxu0 0.0
        %613 = vmatpush.msra.mxu0 0.0
        %614 = vmatpush.msra.mxu0 0.0
        %615 = vmatpush.msra.mxu0 0.0
        %616 = vmatpush.msra.mxu0 0.0
        %617 = vmatpush.msra.mxu0 0.0
        %618 = vmatpush.msra.mxu0 0.0
        %619 = vmatpush.msra.mxu0 0.0
        %620 = vmatpush.msra.mxu0 0.0
        %621 = vmatpush.msra.mxu0 %v538
        %622 = vmatpush.msra.mxu0 %v536
        %623 = vmatpush.msra.mxu0 %v534
        %624 = vmatpush.msra.mxu0 %v532
        %625 = vmatmul.f32.gmra.mxu0 %v569
        %v626 = vpop.f32.mrf.mxu0
        %v627 = vadd.f32 %v550, %v626
        %628 = vmatmul.f32.gmra.mxu0 %v572
        %v629 = vpop.f32.mrf.mxu0
        %v630 = vadd.f32 %v555, %v629
        %631 = vmatmul.f32.gmra.mxu0 %v575
        %v632 = vpop.f32.mrf.mxu0
        %v633 = vadd.f32 %v560, %v632
        %634 = vmatmul.f32.gmra.mxu0 %v578
        %v635 = vpop.f32.mrf.mxu0
        %v636 = vadd.f32 %v565, %v635
        %637 = vdwg.mxu0
        %v638 = vmax.f32 %v598, 0.0
        %v639 = vmax.f32 %v627, 0.0
        %v640 = vmax.f32 %v601, 0.0
        %v641 = vmax.f32 %v630, 0.0
        %v642 = vmax.f32 %v604, 0.0
        %v643 = vmax.f32 %v633, 0.0
        %v644 = vmax.f32 %v607, 0.0
        %v645 = vmax.f32 %v636, 0.0
        %v646 = vld [vmem:[%s5] sm:$0xff]
        %v647 = vld [vmem:[%s6] sm:$0xff]
        %649 = vset.pattern.permute.xlu0 0
        %650 = vperm.xlu0 %649, %v647
        %v651 = vpop.permute.xlu0 %650
        %v654 = vsel %vm567, %v646, 0
        %656 = vmatpush.msra.mxu0 0.0
        %657 = vmatpush.msra.mxu0 0.0
        %658 = vmatpush.msra.mxu0 0.0
        %659 = vmatpush.msra.mxu0 0.0
        %660 = vmatpush.msra.mxu0 0.0
        %661 = vmatpush.msra.mxu0 0.0
        %662 = vmatpush.msra.mxu0 0.0
        %663 = vmatpush.msra.mxu0 0.0
        %664 = vmatpush.msra.mxu0 0.0
        %665 = vmatpush.msra.mxu0 0.0
        %666 = vmatpush.msra.mxu0 0.0
        %667 = vmatpush.msra.mxu0 0.0
        %668 = vmatpush.msra.mxu0 %v644
        %669 = vmatpush.msra.mxu0 %v642
        %670 = vmatpush.msra.mxu0 %v640
        %671 = vmatpush.msra.mxu0 %v638
        %672 = vmatmul.f32.gmra.mxu0 %v654
        %v673 = vpop.f32.mrf.mxu0
        %v674 = vadd.f32 %v651, %v673
        %675 = vdwg.mxu0
        %676 = vmatpush.msra.mxu0 0.0
        %677 = vmatpush.msra.mxu0 0.0
        %678 = vmatpush.msra.mxu0 0.0
        %679 = vmatpush.msra.mxu0 0.0
        %680 = vmatpush.msra.mxu0 0.0
        %681 = vmatpush.msra.mxu0 0.0
        %682 = vmatpush.msra.mxu0 0.0
        %683 = vmatpush.msra.mxu0 0.0
        %684 = vmatpush.msra.mxu0 0.0
        %685 = vmatpush.msra.mxu0 0.0
        %686 = vmatpush.msra.mxu0 0.0
        %687 = vmatpush.msra.mxu0 0.0
        %688 = vmatpush.msra.mxu0 %v645
        %689 = vmatpush.msra.mxu0 %v643
        %690 = vmatpush.msra.mxu0 %v641
        %691 = vmatpush.msra.mxu0 %v639
        %692 = vmatmul.f32.gmra.mxu0 %v654
        %v693 = vpop.f32.mrf.mxu0
        %v694 = vadd.f32 %v651, %v693
        %695 = vdwg.mxu0
        %696 = vst [vmem:[%s284] sm:$0xff] %v674
        %697 = vst [vmem:[%s284 + $0x8] sm:$0xff] %v694
        %s698 = sand.u32 %s181, 1
        %s699 = scalar_lea.sflag [#allocation3], %s698
        %s700 = sand.u32 %s181, 1
        %s701 = smul.addr %s700, 16
        %s702 = scalar_lea.vmem [#allocation2], %s701
        // Predicated region
        $region49: #{tpu_custom_call.1} parent=47 // pred_check
          %p703 = pneg %p191
        $region50: #{tpu_custom_call.1} parent=47 // pred_check_branch
          %705 = sbr.rel (%p703) target = $region52
        $region51: #{tpu_custom_call.1} parent=47 // pred_region
          %s706 = smul.u32 2, %s21
          %s707 = ssub.s32 3, %s706
          %p708 = scmp.lt.s32.totalorder %s707, 2
          %s709 = scalar_select %p708, %s707, 2
          %s710 = smul.u32 8, %s709
          %s711 = ssub.s32 16, %s710
          %s712 = sshll.u32 %s711, 4
          %713 = vsyncadd %s699, %s712
          %p714 = scmp.ne.s32.totalorder 0, %s710
          %s715 = smul.addr %s706, 8
          %s716 = scalar_lea.hbm %s7, %s715
          %s717 = smul.u32 %s709, 8
          %s718 = sshll.u32 %s717, 4
          %s719 = sshll.u32 %s702, 4
          %s720 = int_to_ptr.vmem [resolvable:$true] %s719
          %s721 = sshll.u32 %s716, 4
          %s722 = int_to_ptr.hbm [resolvable:$true] %s721
          %724 = dma.vmem_to_hbm [thread:$0]  (%p714), %s720, %s718, %s722, %s699
        $region52: #{tpu_custom_call.1} parent=47 // pred_fallthru
          _
      $region48: #{tpu_custom_call.1} parent=5 // pred_fallthru
        _
      %p725 = scmp.le.s32.totalorder 2, %s16
      // Predicated region
      $region53: #{tpu_custom_call.1} parent=5 // pred_check
        %p726 = pneg %p725
      $region54: #{tpu_custom_call.1} parent=5 // pred_check_branch
        %728 = sbr.rel (%p726) target = $region56
      $region55: #{tpu_custom_call.1} parent=5 // pred_region
        %s729 = ssub.s32 %s16, 2
        // Predicated region
        $region57: #{tpu_custom_call.1} parent=55 // pred_check
          %p730 = pneg %p197
        $region58: #{tpu_custom_call.1} parent=55 // pred_check_branch
          %732 = sbr.rel (%p730) target = $region60
        $region59: #{tpu_custom_call.1} parent=55 // pred_region
          %s733 = sand.u32 %s182, 1
          %s734 = scalar_lea.sflag [#allocation3], %s733
          %s735 = sand.u32 %s182, 1
          %s736 = smul.addr %s735, 16
          %s737 = scalar_lea.vmem [#allocation2], %s736
          %739 = dma.done %s734, 256
        $region60: #{tpu_custom_call.1} parent=55 // pred_fallthru
          _
      $region56: #{tpu_custom_call.1} parent=5 // pred_fallthru
        _
    $region6: #{tpu_custom_call.1} parent=1 // loop_footer
      %s20 = sadd.s32 1, %s16
    $region7: #{tpu_custom_call.1} parent=1 // loop_footer_branch
      %15 = sbr.rel target = $region3
    $region8: #{tpu_custom_call.1} parent=1 // loop_exit
      _
    %740 = vsyncpa [#allocation3], 1
    %s741 = scalar_lea.sflag [#allocation3], 1
    %742 = vsyncpa %s741, 1

</llo_original>
